<compile_context>
chip_gen: v5e
topology: v5e:2x2
jax: 0.10.0
libtpu: 0.0.40
codegen_flags: <defaults>
</compile_context>

<pallas_src>
import jax
import jax.numpy as jnp
from jax.experimental import pallas as pl
from jax.experimental.pallas import tpu as pltpu


# ----------------------------------------------------------------------------
# Kernel
# ----------------------------------------------------------------------------
def lora_qkv_kernel(x_ref, w_ref, b_ref, aq_ref, bq_ref, av_ref, bv_ref, o_ref):
    """Fused qkv + LoRA delta for one (tm, dim) row tile.

        out[:, :dim]       = x @ W[:, :dim]      + b[:dim]      + (x @ A_q) @ (s*B_q)
        out[:, dim:2*dim]  = x @ W[:, dim:2*dim] + b[dim:2*dim]
        out[:, 2*dim:]     = x @ W[:, 2*dim:]    + b[2*dim:]    + (x @ A_v) @ (s*B_v)
    """
    dim = bq_ref.shape[1]
    x = x_ref[...]                                                  # (tm, dim)

    # Base projection; f32 accumulation, bias kept in f32.
    base = jnp.dot(x, w_ref[...], preferred_element_type=jnp.float32) + b_ref[...]

    # LoRA branches; the (alpha // r) scale is pre-folded into bq/bv.
    mid_q = jnp.dot(x, aq_ref[...], preferred_element_type=jnp.float32).astype(x.dtype)
    mid_v = jnp.dot(x, av_ref[...], preferred_element_type=jnp.float32).astype(x.dtype)
    d_q = jnp.dot(mid_q, bq_ref[...], preferred_element_type=jnp.float32)
    d_v = jnp.dot(mid_v, bv_ref[...], preferred_element_type=jnp.float32)

    # Three lane-aligned stores (q | k | v); each output lane written once.
    o_ref[:, :dim]        = (base[:, :dim] + d_q).astype(o_ref.dtype)
    o_ref[:, dim:2 * dim] = base[:, dim:2 * dim].astype(o_ref.dtype)
    o_ref[:, 2 * dim:]    = (base[:, 2 * dim:] + d_v).astype(o_ref.dtype)


# ----------------------------------------------------------------------------
# Wrapper
# ----------------------------------------------------------------------------
def _round_up(a, b):
    return (a + b - 1) // b * b


def lora_qkv_forward(x, params, *, alpha, r, tile_m=512,
                     compute_dtype=jnp.bfloat16):
    """x: (B, N, dim) -> (B, N, 3*dim), matching _LoRA_qkv_timm.forward."""
    B, N, dim = x.shape
    M = B * N
    out_w = 3 * dim
    out_dtype = x.dtype
    scale = float(alpha // r)        # PyTorch integer floor-division semantics
    cd = jnp.dtype(compute_dtype)

    # Weights pre-transposed so the kernel computes y = x @ W; LoRA scale is
    # folded into the "B" matrices; everything cast to one explicit MXU dtype.
    w_qkv = params['w_qkv'].astype(cd)                                  # (dim, 3*dim)
    b_qkv = params['b_qkv'].reshape(1, out_w).astype(jnp.float32)       # (1, 3*dim)
    a_q = params['a_q'].astype(cd)                                      # (dim, r)
    a_v = params['a_v'].astype(cd)                                      # (dim, r)
    bq_s = (scale * params['b_q'].astype(jnp.float32)).astype(cd)       # (r, dim)
    bv_s = (scale * params['b_v'].astype(jnp.float32)).astype(cd)       # (r, dim)

    x2d = x.reshape(M, dim).astype(cd)

    # Row-tile selection.  No padding: Pallas masks the ragged last tile.
    if M <= 16:
        tm = M                                   # single block == full extent
    else:
        # >= 2 grid steps so a v7x megacore can split the "parallel" axis;
        # multiple of 16 keeps bf16 sublane tiling happy.
        tm = min(int(tile_m), _round_up(pl.cdiv(M, 2), 16))
    grid_m = pl.cdiv(M, tm)

    # Explicit VMEM budget: double-buffered x/out tiles + (at most
    # double-buffered) resident weights, generous headroom, 32 MiB floor.
    csz, osz = cd.itemsize, jnp.dtype(out_dtype).itemsize
    tiles = 2 * (tm * dim * csz + tm * out_w * osz)
    weights = 2 * ((dim * out_w + 2 * dim * r + 2 * r * dim) * csz + out_w * 4)
    vmem_limit = int(min(max(2 * (tiles + weights), 32 << 20), 120 << 20))

    def make_in_specs(single_buffer_weights):
        # Grid-invariant operands: block index never changes, so single
        # buffering halves their VMEM residency.
        wkw = ({'pipeline_mode': pl.Buffered(1)}
               if single_buffer_weights else {})
        return [
            pl.BlockSpec((tm, dim), lambda i: (i, 0)),             # x rows
            pl.BlockSpec((dim, out_w), lambda i: (0, 0), **wkw),   # W_qkv
            pl.BlockSpec((1, out_w), lambda i: (0, 0), **wkw),     # bias (f32)
            pl.BlockSpec((dim, r), lambda i: (0, 0), **wkw),       # A_q
            pl.BlockSpec((r, dim), lambda i: (0, 0), **wkw),       # s*B_q
            pl.BlockSpec((dim, r), lambda i: (0, 0), **wkw),       # A_v
            pl.BlockSpec((r, dim), lambda i: (0, 0), **wkw),       # s*B_v
        ]

    def run(in_specs):
        return pl.pallas_call(
            lora_qkv_kernel,
            out_shape=jax.ShapeDtypeStruct((M, out_w), out_dtype),
            grid=(grid_m,),
            in_specs=in_specs,
            out_specs=pl.BlockSpec((tm, out_w), lambda i: (i, 0)),
            compiler_params=pltpu.CompilerParams(
                dimension_semantics=("parallel",),
                vmem_limit_bytes=vmem_limit),
        )(x2d, w_qkv, b_qkv, a_q, bq_s, a_v, bv_s)

    try:
        out2d = run(make_in_specs(True))
    except Exception:
        # jax versions without BlockSpec.pipeline_mode / Buffered(1): fall back
        # to default double-buffering (identical math, just more VMEM).
        out2d = run(make_in_specs(False))

    return out2d.reshape(B, N, out_w)


# ----------------------------------------------------------------------------
if __name__ == "__main__":
    # Small config consistent with the module: ViT tokens (B, N, dim),
    # qkv: Linear(dim, 3*dim), LoRA rank r, scale alpha // r.
    B, N, dim, r, alpha = 2, 8, 128, 4, 8

    key = jax.random.PRNGKey(0)
    ks = jax.random.split(key, 7)
    s = 0.05
    x = jax.random.normal(ks[0], (B, N, dim), jnp.float32)
    params = {
        'w_qkv': s * jax.random.normal(ks[1], (dim, 3 * dim), jnp.float32),
        'b_qkv': s * jax.random.normal(ks[2], (1, 3 * dim), jnp.float32),
        'a_q': s * jax.random.normal(ks[3], (dim, r), jnp.float32),
        'b_q': s * jax.random.normal(ks[4], (r, dim), jnp.float32),
        'a_v': s * jax.random.normal(ks[5], (dim, r), jnp.float32),
        'b_v': s * jax.random.normal(ks[6], (r, dim), jnp.float32),
    }

    # Pure-JAX reference mirroring the PyTorch forward exactly (f32).
    scale_ref = alpha // r
    qkv_ref = x @ params['w_qkv'] + params['b_qkv']
    new_q = (x @ params['a_q']) @ params['b_q']
    new_v = (x @ params['a_v']) @ params['b_v']
    ref = qkv_ref.at[:, :, :dim].add(scale_ref * new_q)
    ref = ref.at[:, :, -dim:].add(scale_ref * new_v)

    # Default (bf16 MXU) path.
    out = jax.block_until_ready(lora_qkv_forward(x, params, alpha=alpha, r=r))
    assert out.shape == (B, N, 3 * dim)
    assert bool(jnp.all(jnp.isfinite(out)))
    assert bool(jnp.allclose(out, ref, atol=1e-2, rtol=1e-2))

    # f32 compute path: checks the fused math to tight tolerance.
    out_f32 = jax.block_until_ready(
        lora_qkv_forward(x, params, alpha=alpha, r=r,
                         compute_dtype=jnp.float32))
    assert bool(jnp.allclose(out_f32, ref, atol=1e-4, rtol=1e-4))

    print("KERNEL_OK")
</pallas_src>

<mosaic_0001>
module attributes {stable_mosaic.version = 11 : i64} {
  func.func @lora_qkv_kernel(%arg0: i32, %arg1: memref<16x128xbf16, #tpu.memory_space<vmem>>, %arg2: memref<128x384xbf16, #tpu.memory_space<vmem>>, %arg3: memref<1x384xf32, #tpu.memory_space<vmem>>, %arg4: memref<128x4xbf16, #tpu.memory_space<vmem>>, %arg5: memref<4x128xbf16, #tpu.memory_space<vmem>>, %arg6: memref<128x4xbf16, #tpu.memory_space<vmem>>, %arg7: memref<4x128xbf16, #tpu.memory_space<vmem>>, %arg8: memref<16x384xf32, #tpu.memory_space<vmem>>) attributes {dimension_semantics = [#tpu.dimension_semantics<parallel>], iteration_bounds = array<i64: 1>, scalar_prefetch = 0 : i64, scratch_operands = 0 : i64, tpu.core_type = #tpu.core_type<tc>, window_params = [{transform_indices = @transform_0, window_bounds = array<i64: 16, 128>}, {pipeline_mode = #tpu.pipeline_mode<synchronous>, transform_indices = @transform_1, window_bounds = array<i64: 128, 384>}, {pipeline_mode = #tpu.pipeline_mode<synchronous>, transform_indices = @transform_2, window_bounds = array<i64: 1, 384>}, {pipeline_mode = #tpu.pipeline_mode<synchronous>, transform_indices = @transform_3, window_bounds = array<i64: 128, 4>}, {pipeline_mode = #tpu.pipeline_mode<synchronous>, transform_indices = @transform_4, window_bounds = array<i64: 4, 128>}, {pipeline_mode = #tpu.pipeline_mode<synchronous>, transform_indices = @transform_5, window_bounds = array<i64: 128, 4>}, {pipeline_mode = #tpu.pipeline_mode<synchronous>, transform_indices = @transform_6, window_bounds = array<i64: 4, 128>}, {transform_indices = @transform_7, window_bounds = array<i64: 16, 384>}]} {
    %c0 = arith.constant 0 : index
    %c0_0 = arith.constant 0 : index
    %0 = vector.load %arg1[%c0, %c0_0] : memref<16x128xbf16, #tpu.memory_space<vmem>>, vector<16x128xbf16>
    %c0_1 = arith.constant 0 : index
    %c0_2 = arith.constant 0 : index
    %1 = vector.load %arg2[%c0_1, %c0_2] : memref<128x384xbf16, #tpu.memory_space<vmem>>, vector<128x384xbf16>
    %cst = arith.constant dense<0.000000e+00> : vector<16x384xf32>
    %2 = tpu.matmul %0, %1, %cst {dimension_numbers = #tpu.dot_dimension_numbers<[1], [0], [0], [1], [0, 0, 1, 1], [], []>} : vector<16x128xbf16>, vector<128x384xbf16>, vector<16x384xf32> -> vector<16x384xf32>
    %c0_3 = arith.constant 0 : index
    %c0_4 = arith.constant 0 : index
    %3 = vector.load %arg3[%c0_3, %c0_4] : memref<1x384xf32, #tpu.memory_space<vmem>>, vector<1x384xf32>
    %4 = vector.broadcast %3 : vector<1x384xf32> to vector<16x384xf32>
    %5 = arith.addf %2, %4 : vector<16x384xf32>
    %c0_5 = arith.constant 0 : index
    %c0_6 = arith.constant 0 : index
    %6 = vector.load %arg4[%c0_5, %c0_6] : memref<128x4xbf16, #tpu.memory_space<vmem>>, vector<128x4xbf16>
    %cst_7 = arith.constant dense<0.000000e+00> : vector<16x4xf32>
    %7 = tpu.matmul %0, %6, %cst_7 {dimension_numbers = #tpu.dot_dimension_numbers<[1], [0], [0], [1], [0, 0, 1, 1], [], []>} : vector<16x128xbf16>, vector<128x4xbf16>, vector<16x4xf32> -> vector<16x4xf32>
    %8 = arith.truncf %7 : vector<16x4xf32> to vector<16x4xbf16>
    %c0_8 = arith.constant 0 : index
    %c0_9 = arith.constant 0 : index
    %9 = vector.load %arg6[%c0_8, %c0_9] : memref<128x4xbf16, #tpu.memory_space<vmem>>, vector<128x4xbf16>
    %cst_10 = arith.constant dense<0.000000e+00> : vector<16x4xf32>
    %10 = tpu.matmul %0, %9, %cst_10 {dimension_numbers = #tpu.dot_dimension_numbers<[1], [0], [0], [1], [0, 0, 1, 1], [], []>} : vector<16x128xbf16>, vector<128x4xbf16>, vector<16x4xf32> -> vector<16x4xf32>
    %11 = arith.truncf %10 : vector<16x4xf32> to vector<16x4xbf16>
    %c0_11 = arith.constant 0 : index
    %c0_12 = arith.constant 0 : index
    %12 = vector.load %arg5[%c0_11, %c0_12] : memref<4x128xbf16, #tpu.memory_space<vmem>>, vector<4x128xbf16>
    %cst_13 = arith.constant dense<0.000000e+00> : vector<16x128xf32>
    %13 = tpu.matmul %8, %12, %cst_13 {dimension_numbers = #tpu.dot_dimension_numbers<[1], [0], [0], [1], [0, 0, 1, 1], [], []>} : vector<16x4xbf16>, vector<4x128xbf16>, vector<16x128xf32> -> vector<16x128xf32>
    %c0_14 = arith.constant 0 : index
    %c0_15 = arith.constant 0 : index
    %14 = vector.load %arg7[%c0_14, %c0_15] : memref<4x128xbf16, #tpu.memory_space<vmem>>, vector<4x128xbf16>
    %cst_16 = arith.constant dense<0.000000e+00> : vector<16x128xf32>
    %15 = tpu.matmul %11, %14, %cst_16 {dimension_numbers = #tpu.dot_dimension_numbers<[1], [0], [0], [1], [0, 0, 1, 1], [], []>} : vector<16x4xbf16>, vector<4x128xbf16>, vector<16x128xf32> -> vector<16x128xf32>
    %16 = vector.extract_strided_slice %5 {offsets = [0, 0], sizes = [16, 128], strides = [1, 1]} : vector<16x384xf32> to vector<16x128xf32>
    %17 = arith.addf %16, %13 : vector<16x128xf32>
    %c0_17 = arith.constant 0 : index
    %c0_18 = arith.constant 0 : index
    %18 = vector.load %arg8[%c0_17, %c0_18] : memref<16x384xf32, #tpu.memory_space<vmem>>, vector<16x128xf32>
    tpu.vector_store %arg8[%c0_17, %c0_18], %17 {strides = array<i32>} : memref<16x384xf32, #tpu.memory_space<vmem>>, vector<16x128xf32>,
    %19 = vector.extract_strided_slice %5 {offsets = [0, 128], sizes = [16, 128], strides = [1, 1]} : vector<16x384xf32> to vector<16x128xf32>
    %c0_19 = arith.constant 0 : index
    %c128 = arith.constant 128 : index
    %20 = vector.load %arg8[%c0_19, %c128] : memref<16x384xf32, #tpu.memory_space<vmem>>, vector<16x128xf32>
    tpu.vector_store %arg8[%c0_19, %c128], %19 {strides = array<i32>} : memref<16x384xf32, #tpu.memory_space<vmem>>, vector<16x128xf32>,
    %21 = vector.extract_strided_slice %5 {offsets = [0, 256], sizes = [16, 128], strides = [1, 1]} : vector<16x384xf32> to vector<16x128xf32>
    %22 = arith.addf %21, %15 : vector<16x128xf32>
    %c0_20 = arith.constant 0 : index
    %c256 = arith.constant 256 : index
    %23 = vector.load %arg8[%c0_20, %c256] : memref<16x384xf32, #tpu.memory_space<vmem>>, vector<16x128xf32>
    tpu.vector_store %arg8[%c0_20, %c256], %22 {strides = array<i32>} : memref<16x384xf32, #tpu.memory_space<vmem>>, vector<16x128xf32>,
    return
  }
  func.func @transform_0(%arg0: i32) -> (i32, i32) {
    %c0_i32 = arith.constant 0 : i32
    %c0_i32_0 = arith.constant 0 : i32
    return %arg0, %c0_i32 : i32, i32
  }
  func.func @transform_1(%arg0: i32) -> (i32, i32) {
    %c0_i32 = arith.constant 0 : i32
    %c0_i32_0 = arith.constant 0 : i32
    %c0_i32_1 = arith.constant 0 : i32
    return %c0_i32, %c0_i32_0 : i32, i32
  }
  func.func @transform_2(%arg0: i32) -> (i32, i32) {
    %c0_i32 = arith.constant 0 : i32
    %c0_i32_0 = arith.constant 0 : i32
    %c0_i32_1 = arith.constant 0 : i32
    return %c0_i32, %c0_i32_0 : i32, i32
  }
  func.func @transform_3(%arg0: i32) -> (i32, i32) {
    %c0_i32 = arith.constant 0 : i32
    %c0_i32_0 = arith.constant 0 : i32
    %c0_i32_1 = arith.constant 0 : i32
    return %c0_i32, %c0_i32_0 : i32, i32
  }
  func.func @transform_4(%arg0: i32) -> (i32, i32) {
    %c0_i32 = arith.constant 0 : i32
    %c0_i32_0 = arith.constant 0 : i32
    %c0_i32_1 = arith.constant 0 : i32
    return %c0_i32, %c0_i32_0 : i32, i32
  }
  func.func @transform_5(%arg0: i32) -> (i32, i32) {
    %c0_i32 = arith.constant 0 : i32
    %c0_i32_0 = arith.constant 0 : i32
    %c0_i32_1 = arith.constant 0 : i32
    return %c0_i32, %c0_i32_0 : i32, i32
  }
  func.func @transform_6(%arg0: i32) -> (i32, i32) {
    %c0_i32 = arith.constant 0 : i32
    %c0_i32_0 = arith.constant 0 : i32
    %c0_i32_1 = arith.constant 0 : i32
    return %c0_i32, %c0_i32_0 : i32, i32
  }
  func.func @transform_7(%arg0: i32) -> (i32, i32) {
    %c0_i32 = arith.constant 0 : i32
    %c0_i32_0 = arith.constant 0 : i32
    return %arg0, %c0_i32 : i32, i32
  }
}

module attributes {stable_mosaic.version = 11 : i64} {
  func.func @lora_qkv_kernel(%arg0: i32, %arg1: memref<16x128xbf16, #tpu.memory_space<vmem>>, %arg2: memref<128x384xbf16, #tpu.memory_space<vmem>>, %arg3: memref<1x384xf32, #tpu.memory_space<vmem>>, %arg4: memref<128x4xbf16, #tpu.memory_space<vmem>>, %arg5: memref<4x128xbf16, #tpu.memory_space<vmem>>, %arg6: memref<128x4xbf16, #tpu.memory_space<vmem>>, %arg7: memref<4x128xbf16, #tpu.memory_space<vmem>>, %arg8: memref<16x384xf32, #tpu.memory_space<vmem>>) attributes {dimension_semantics = [#tpu.dimension_semantics<parallel>], iteration_bounds = array<i64: 1>, scalar_prefetch = 0 : i64, scratch_operands = 0 : i64, tpu.core_type = #tpu.core_type<tc>, window_params = [{transform_indices = @transform_0, window_bounds = array<i64: 16, 128>}, {pipeline_mode = #tpu.pipeline_mode<synchronous>, transform_indices = @transform_1, window_bounds = array<i64: 128, 384>}, {pipeline_mode = #tpu.pipeline_mode<synchronous>, transform_indices = @transform_2, window_bounds = array<i64: 1, 384>}, {pipeline_mode = #tpu.pipeline_mode<synchronous>, transform_indices = @transform_3, window_bounds = array<i64: 128, 4>}, {pipeline_mode = #tpu.pipeline_mode<synchronous>, transform_indices = @transform_4, window_bounds = array<i64: 4, 128>}, {pipeline_mode = #tpu.pipeline_mode<synchronous>, transform_indices = @transform_5, window_bounds = array<i64: 128, 4>}, {pipeline_mode = #tpu.pipeline_mode<synchronous>, transform_indices = @transform_6, window_bounds = array<i64: 4, 128>}, {transform_indices = @transform_7, window_bounds = array<i64: 16, 384>}]} {
    %c0 = arith.constant 0 : index
    %c0_0 = arith.constant 0 : index
    %0 = vector.load %arg1[%c0, %c0_0] : memref<16x128xbf16, #tpu.memory_space<vmem>>, vector<16x128xbf16>
    %c0_1 = arith.constant 0 : index
    %c0_2 = arith.constant 0 : index
    %1 = vector.load %arg2[%c0_1, %c0_2] : memref<128x384xbf16, #tpu.memory_space<vmem>>, vector<128x384xbf16>
    %cst = arith.constant dense<0.000000e+00> : vector<16x384xf32>
    %2 = tpu.matmul %0, %1, %cst {dimension_numbers = #tpu.dot_dimension_numbers<[1], [0], [0], [1], [0, 0, 1, 1], [], []>} : vector<16x128xbf16>, vector<128x384xbf16>, vector<16x384xf32> -> vector<16x384xf32>
    %c0_3 = arith.constant 0 : index
    %c0_4 = arith.constant 0 : index
    %3 = vector.load %arg3[%c0_3, %c0_4] : memref<1x384xf32, #tpu.memory_space<vmem>>, vector<1x384xf32>
    %4 = vector.broadcast %3 : vector<1x384xf32> to vector<16x384xf32>
    %5 = arith.addf %2, %4 : vector<16x384xf32>
    %c0_5 = arith.constant 0 : index
    %c0_6 = arith.constant 0 : index
    %6 = vector.load %arg4[%c0_5, %c0_6] : memref<128x4xbf16, #tpu.memory_space<vmem>>, vector<128x4xbf16>
    %cst_7 = arith.constant dense<0.000000e+00> : vector<16x4xf32>
    %7 = tpu.matmul %0, %6, %cst_7 {dimension_numbers = #tpu.dot_dimension_numbers<[1], [0], [0], [1], [0, 0, 1, 1], [], []>} : vector<16x128xbf16>, vector<128x4xbf16>, vector<16x4xf32> -> vector<16x4xf32>
    %8 = arith.truncf %7 : vector<16x4xf32> to vector<16x4xbf16>
    %c0_8 = arith.constant 0 : index
    %c0_9 = arith.constant 0 : index
    %9 = vector.load %arg6[%c0_8, %c0_9] : memref<128x4xbf16, #tpu.memory_space<vmem>>, vector<128x4xbf16>
    %cst_10 = arith.constant dense<0.000000e+00> : vector<16x4xf32>
    %10 = tpu.matmul %0, %9, %cst_10 {dimension_numbers = #tpu.dot_dimension_numbers<[1], [0], [0], [1], [0, 0, 1, 1], [], []>} : vector<16x128xbf16>, vector<128x4xbf16>, vector<16x4xf32> -> vector<16x4xf32>
    %11 = arith.truncf %10 : vector<16x4xf32> to vector<16x4xbf16>
    %c0_11 = arith.constant 0 : index
    %c0_12 = arith.constant 0 : index
    %12 = vector.load %arg5[%c0_11, %c0_12] : memref<4x128xbf16, #tpu.memory_space<vmem>>, vector<4x128xbf16>
    %cst_13 = arith.constant dense<0.000000e+00> : vector<16x128xf32>
    %13 = tpu.matmul %8, %12, %cst_13 {dimension_numbers = #tpu.dot_dimension_numbers<[1], [0], [0], [1], [0, 0, 1, 1], [], []>} : vector<16x4xbf16>, vector<4x128xbf16>, vector<16x128xf32> -> vector<16x128xf32>
    %c0_14 = arith.constant 0 : index
    %c0_15 = arith.constant 0 : index
    %14 = vector.load %arg7[%c0_14, %c0_15] : memref<4x128xbf16, #tpu.memory_space<vmem>>, vector<4x128xbf16>
    %cst_16 = arith.constant dense<0.000000e+00> : vector<16x128xf32>
    %15 = tpu.matmul %11, %14, %cst_16 {dimension_numbers = #tpu.dot_dimension_numbers<[1], [0], [0], [1], [0, 0, 1, 1], [], []>} : vector<16x4xbf16>, vector<4x128xbf16>, vector<16x128xf32> -> vector<16x128xf32>
    %16 = vector.extract_strided_slice %5 {offsets = [0, 0], sizes = [16, 128], strides = [1, 1]} : vector<16x384xf32> to vector<16x128xf32>
    %17 = arith.addf %16, %13 : vector<16x128xf32>
    %c0_17 = arith.constant 0 : index
    %c0_18 = arith.constant 0 : index
    %18 = vector.load %arg8[%c0_17, %c0_18] : memref<16x384xf32, #tpu.memory_space<vmem>>, vector<16x128xf32>
    tpu.vector_store %arg8[%c0_17, %c0_18], %17 {strides = array<i32>} : memref<16x384xf32, #tpu.memory_space<vmem>>, vector<16x128xf32>,
    %19 = vector.extract_strided_slice %5 {offsets = [0, 128], sizes = [16, 128], strides = [1, 1]} : vector<16x384xf32> to vector<16x128xf32>
    %c0_19 = arith.constant 0 : index
    %c128 = arith.constant 128 : index
    %20 = vector.load %arg8[%c0_19, %c128] : memref<16x384xf32, #tpu.memory_space<vmem>>, vector<16x128xf32>
    tpu.vector_store %arg8[%c0_19, %c128], %19 {strides = array<i32>} : memref<16x384xf32, #tpu.memory_space<vmem>>, vector<16x128xf32>,
    %21 = vector.extract_strided_slice %5 {offsets = [0, 256], sizes = [16, 128], strides = [1, 1]} : vector<16x384xf32> to vector<16x128xf32>
    %22 = arith.addf %21, %15 : vector<16x128xf32>
    %c0_20 = arith.constant 0 : index
    %c256 = arith.constant 256 : index
    %23 = vector.load %arg8[%c0_20, %c256] : memref<16x384xf32, #tpu.memory_space<vmem>>, vector<16x128xf32>
    tpu.vector_store %arg8[%c0_20, %c256], %22 {strides = array<i32>} : memref<16x384xf32, #tpu.memory_space<vmem>>, vector<16x128xf32>,
    return
  }
  func.func @transform_0(%arg0: i32) -> (i32, i32) {
    %c0_i32 = arith.constant 0 : i32
    %c0_i32_0 = arith.constant 0 : i32
    return %arg0, %c0_i32 : i32, i32
  }
  func.func @transform_1(%arg0: i32) -> (i32, i32) {
    %c0_i32 = arith.constant 0 : i32
    %c0_i32_0 = arith.constant 0 : i32
    %c0_i32_1 = arith.constant 0 : i32
    return %c0_i32, %c0_i32_0 : i32, i32
  }
  func.func @transform_2(%arg0: i32) -> (i32, i32) {
    %c0_i32 = arith.constant 0 : i32
    %c0_i32_0 = arith.constant 0 : i32
    %c0_i32_1 = arith.constant 0 : i32
    return %c0_i32, %c0_i32_0 : i32, i32
  }
  func.func @transform_3(%arg0: i32) -> (i32, i32) {
    %c0_i32 = arith.constant 0 : i32
    %c0_i32_0 = arith.constant 0 : i32
    %c0_i32_1 = arith.constant 0 : i32
    return %c0_i32, %c0_i32_0 : i32, i32
  }
  func.func @transform_4(%arg0: i32) -> (i32, i32) {
    %c0_i32 = arith.constant 0 : i32
    %c0_i32_0 = arith.constant 0 : i32
    %c0_i32_1 = arith.constant 0 : i32
    return %c0_i32, %c0_i32_0 : i32, i32
  }
  func.func @transform_5(%arg0: i32) -> (i32, i32) {
    %c0_i32 = arith.constant 0 : i32
    %c0_i32_0 = arith.constant 0 : i32
    %c0_i32_1 = arith.constant 0 : i32
    return %c0_i32, %c0_i32_0 : i32, i32
  }
  func.func @transform_6(%arg0: i32) -> (i32, i32) {
    %c0_i32 = arith.constant 0 : i32
    %c0_i32_0 = arith.constant 0 : i32
    %c0_i32_1 = arith.constant 0 : i32
    return %c0_i32, %c0_i32_0 : i32, i32
  }
  func.func @transform_7(%arg0: i32) -> (i32, i32) {
    %c0_i32 = arith.constant 0 : i32
    %c0_i32_0 = arith.constant 0 : i32
    return %arg0, %c0_i32 : i32, i32
  }
}

</mosaic_0001>

<llo_original>
// kernel: tpu_custom_call.1
$region0: #{tpu_custom_call.1}
  #allocation0 [shape = 'u32[]', space=smem, size = 0x4, offset = 0x4, fixed_abs, tag = 'smem constant byte address 0x4 - core index']
  #allocation1 [shape = 'u32[72,128]{1,0:T(1,128)}', space=vmem, size = 0x9000, scoped, tag = 'internal scratch']
  %s0 = inlined_call_operand.vmem [shape: bf16[16,128], index: 0, kind: input, shape index: {}]
  %s1 = inlined_call_operand.hbm [shape: bf16[128,384], index: 1, kind: input, shape index: {}]
  %s2 = inlined_call_operand.vmem [shape: f32[1,384], index: 2, kind: input, shape index: {}]
  %s3 = inlined_call_operand.vmem [shape: bf16[128,4], index: 3, kind: input, shape index: {}]
  %s4 = inlined_call_operand.vmem [shape: bf16[4,128], index: 4, kind: input, shape index: {}]
  %s5 = inlined_call_operand.vmem [shape: bf16[128,4], index: 5, kind: input, shape index: {}]
  %s6 = inlined_call_operand.vmem [shape: bf16[4,128], index: 6, kind: input, shape index: {}]
  %s7 = inlined_call_operand.hbm [shape: f32[16,384], index: 7, kind: output, shape index: {}]
  %s8 = sld [smem:[#allocation0]]
  $region42: #{tpu_custom_call.1} parent=0
    _
  %s10 = ssub.s32 1, %s8
  %s11 = scalar_select 0, %s10, %s8
  $region1: #{tpu_custom_call.1} parent=0
    #allocation2 [shape = 'u8[98304]{0}', space=vmem, size = 0x18000, scoped, tag = 'input window, operand 1, single buffered']
    #allocation3 [shape = 's32[1]{0}', space=sflag, size = 0x4, scoped, tag = 'scoped memory for tpu_custom_call.1']
    #allocation4 [shape = 's32[1]{0}', space=sflag, size = 0x4, scoped, tag = 'scoped memory for tpu_custom_call.1']
    #allocation5 [shape = 'u8[24576]{0}', space=vmem, size = 0x6000, scoped, tag = 'output window, operand 0, single buffered']
    %12 = vsyncpa [#allocation3], 0
    %13 = vsyncpa [#allocation4], 0
    // Predicated region
    $region2: #{tpu_custom_call.1} parent=1 // pred_check
      _
    $region3: #{tpu_custom_call.1} parent=1 // pred_check_branch
      %15 = sbr.rel (0) target = $region5
    $region4: #{tpu_custom_call.1} parent=1 // pred_region
      _
    $region5: #{tpu_custom_call.1} parent=1 // pred_fallthru
      _
    // Predicated region
    $region6: #{tpu_custom_call.1} parent=1 // pred_check
      _
    $region7: #{tpu_custom_call.1} parent=1 // pred_check_branch
      %17 = sbr.rel (0) target = $region9
    $region8: #{tpu_custom_call.1} parent=1 // pred_region
      %19 = vsyncadd [#allocation3], 0
      %s20 = sshll.u32 %s1, 4
      %s21 = int_to_ptr.hbm [resolvable:$true] %s20
      %s22 = sshll.u32 [#allocation2], 4
      %s23 = int_to_ptr.vmem [resolvable:$true] %s22
      %28 = dma.hbm_to_vmem [thread:$0]  %s21, 3072, %s23, [#allocation3], 192, 192, 12
    $region9: #{tpu_custom_call.1} parent=1 // pred_fallthru
      _
    // Predicated region
    $region10: #{tpu_custom_call.1} parent=1 // pred_check
      _
    $region11: #{tpu_custom_call.1} parent=1 // pred_check_branch
      %30 = sbr.rel (0) target = $region13
    $region12: #{tpu_custom_call.1} parent=1 // pred_region
      _
    $region13: #{tpu_custom_call.1} parent=1 // pred_fallthru
      _
    // Predicated region
    $region14: #{tpu_custom_call.1} parent=1 // pred_check
      _
    $region15: #{tpu_custom_call.1} parent=1 // pred_check_branch
      %32 = sbr.rel (0) target = $region17
    $region16: #{tpu_custom_call.1} parent=1 // pred_region
      _
    $region17: #{tpu_custom_call.1} parent=1 // pred_fallthru
      _
    // Predicated region
    $region18: #{tpu_custom_call.1} parent=1 // pred_check
      _
    $region19: #{tpu_custom_call.1} parent=1 // pred_check_branch
      %34 = sbr.rel (0) target = $region21
    $region20: #{tpu_custom_call.1} parent=1 // pred_region
      _
    $region21: #{tpu_custom_call.1} parent=1 // pred_fallthru
      _
    // Predicated region
    $region22: #{tpu_custom_call.1} parent=1 // pred_check
      _
    $region23: #{tpu_custom_call.1} parent=1 // pred_check_branch
      %36 = sbr.rel (0) target = $region25
    $region24: #{tpu_custom_call.1} parent=1 // pred_region
      _
    $region25: #{tpu_custom_call.1} parent=1 // pred_fallthru
      _
    // Predicated region
    $region26: #{tpu_custom_call.1} parent=1 // pred_check
      _
    $region27: #{tpu_custom_call.1} parent=1 // pred_check_branch
      %38 = sbr.rel (0) target = $region29
    $region28: #{tpu_custom_call.1} parent=1 // pred_region
      _
    $region29: #{tpu_custom_call.1} parent=1 // pred_fallthru
      _
    // Predicated region
    $region30: #{tpu_custom_call.1} parent=1 // pred_check
      _
    $region31: #{tpu_custom_call.1} parent=1 // pred_check_branch
      %40 = sbr.rel (0) target = $region33
    $region32: #{tpu_custom_call.1} parent=1 // pred_region
      %42 = dma.done [#allocation3], 3072
    $region33: #{tpu_custom_call.1} parent=1 // pred_fallthru
      _
    %v44 = vld [vmem:[%s0] sm:$0xf]
    %v45 = vld [vmem:[%s0 + $0x4] sm:$0xf]
    %v46 = vld [vmem:[#allocation2] sm:$0xff]
    %v47 = vld [vmem:[#allocation2 + $0x8] sm:$0xf]
    %v48 = vld [vmem:[#allocation2 + $0xc] sm:$0xff]
    %v49 = vld [vmem:[#allocation2 + $0x14] sm:$0xf]
    %v50 = vld [vmem:[#allocation2 + $0x18] sm:$0xff]
    %v51 = vld [vmem:[#allocation2 + $0x20] sm:$0xf]
    %v52 = vld [vmem:[#allocation2 + $0x24] sm:$0xff]
    %v53 = vld [vmem:[#allocation2 + $0x2c] sm:$0xf]
    %v54 = vld [vmem:[#allocation2 + $0x30] sm:$0xff]
    %v55 = vld [vmem:[#allocation2 + $0x38] sm:$0xf]
    %v56 = vld [vmem:[#allocation2 + $0x3c] sm:$0xff]
    %v57 = vld [vmem:[#allocation2 + $0x44] sm:$0xf]
    %v58 = vld [vmem:[#allocation2 + $0x48] sm:$0xff]
    %v59 = vld [vmem:[#allocation2 + $0x50] sm:$0xf]
    %v60 = vld [vmem:[#allocation2 + $0x54] sm:$0xff]
    %v61 = vld [vmem:[#allocation2 + $0x5c] sm:$0xf]
    %v62 = vld [vmem:[#allocation2 + $0x60] sm:$0xff]
    %v63 = vld [vmem:[#allocation2 + $0x68] sm:$0xf]
    %v64 = vld [vmem:[#allocation2 + $0x6c] sm:$0xff]
    %v65 = vld [vmem:[#allocation2 + $0x74] sm:$0xf]
    %v66 = vld [vmem:[#allocation2 + $0x78] sm:$0xff]
    %v67 = vld [vmem:[#allocation2 + $0x80] sm:$0xf]
    %v68 = vld [vmem:[#allocation2 + $0x84] sm:$0xff]
    %v69 = vld [vmem:[#allocation2 + $0x8c] sm:$0xf]
    %v70 = vld [vmem:[#allocation2 + $0x90] sm:$0xff]
    %v71 = vld [vmem:[#allocation2 + $0x98] sm:$0xf]
    %v72 = vld [vmem:[#allocation2 + $0x9c] sm:$0xff]
    %v73 = vld [vmem:[#allocation2 + $0xa4] sm:$0xf]
    %v74 = vld [vmem:[#allocation2 + $0xa8] sm:$0xff]
    %v75 = vld [vmem:[#allocation2 + $0xb0] sm:$0xf]
    %v76 = vld [vmem:[#allocation2 + $0xb4] sm:$0xff]
    %v77 = vld [vmem:[#allocation2 + $0xbc] sm:$0xf]
    %v78 = vld [vmem:[%s2] sm:$0x7]
    %v80 = vperm.slane %v78, 0
    %v81 = vperm.slane %v78, 1
    %v82 = vperm.slane %v78, 2
    %v88 = vunpack.c.l.b16 %v44
    %v89 = vunpack.c.l.b16 %v45
    %v90 = vpack.c.b16 %v89, %v88
    %v124 = vunpack.c.l.b16 %v46
    %v125 = vunpack.c.h.b16 %v46
    %v126 = vunpack.c.l.b16 %v47
    %v127 = vunpack.c.l.b16 %v48
    %v128 = vunpack.c.h.b16 %v48
    %v129 = vunpack.c.l.b16 %v49
    %v130 = vunpack.c.l.b16 %v50
    %v131 = vunpack.c.h.b16 %v50
    %v132 = vunpack.c.l.b16 %v51
    %v133 = vunpack.c.l.b16 %v52
    %v134 = vunpack.c.h.b16 %v52
    %v135 = vunpack.c.l.b16 %v53
    %v136 = vunpack.c.l.b16 %v54
    %v137 = vunpack.c.h.b16 %v54
    %v138 = vunpack.c.l.b16 %v55
    %v139 = vunpack.c.l.b16 %v56
    %v140 = vunpack.c.h.b16 %v56
    %v141 = vunpack.c.l.b16 %v57
    %v142 = vunpack.c.l.b16 %v58
    %v143 = vunpack.c.h.b16 %v58
    %v144 = vunpack.c.l.b16 %v59
    %v145 = vunpack.c.l.b16 %v60
    %v146 = vunpack.c.h.b16 %v60
    %v147 = vunpack.c.l.b16 %v61
    %v148 = vunpack.c.l.b16 %v62
    %v149 = vunpack.c.h.b16 %v62
    %v150 = vunpack.c.l.b16 %v63
    %v151 = vunpack.c.l.b16 %v64
    %v152 = vunpack.c.h.b16 %v64
    %v153 = vunpack.c.l.b16 %v65
    %v154 = vunpack.c.l.b16 %v66
    %v155 = vunpack.c.h.b16 %v66
    %v156 = vunpack.c.l.b16 %v67
    %v157 = vunpack.c.l.b16 %v68
    %v158 = vunpack.c.h.b16 %v68
    %v159 = vunpack.c.l.b16 %v69
    %v160 = vunpack.c.l.b16 %v70
    %v161 = vunpack.c.h.b16 %v70
    %v162 = vunpack.c.l.b16 %v71
    %v163 = vunpack.c.l.b16 %v72
    %v164 = vunpack.c.h.b16 %v72
    %v165 = vunpack.c.l.b16 %v73
    %v166 = vunpack.c.l.b16 %v74
    %v167 = vunpack.c.h.b16 %v74
    %v168 = vunpack.c.l.b16 %v75
    %v169 = vunpack.c.l.b16 %v76
    %v170 = vunpack.c.h.b16 %v76
    %v171 = vunpack.c.l.b16 %v77
    %v172 = vpack.c.b16 %v127, %v124
    %v173 = vpack.c.b16 %v128, %v125
    %v174 = vpack.c.b16 %v129, %v126
    %v175 = vpack.c.b16 %v133, %v130
    %v176 = vpack.c.b16 %v134, %v131
    %v177 = vpack.c.b16 %v135, %v132
    %v178 = vpack.c.b16 %v139, %v136
    %v179 = vpack.c.b16 %v140, %v137
    %v180 = vpack.c.b16 %v141, %v138
    %v181 = vpack.c.b16 %v145, %v142
    %v182 = vpack.c.b16 %v146, %v143
    %v183 = vpack.c.b16 %v147, %v144
    %v184 = vpack.c.b16 %v151, %v148
    %v185 = vpack.c.b16 %v152, %v149
    %v186 = vpack.c.b16 %v153, %v150
    %v187 = vpack.c.b16 %v157, %v154
    %v188 = vpack.c.b16 %v158, %v155
    %v189 = vpack.c.b16 %v159, %v156
    %v190 = vpack.c.b16 %v163, %v160
    %v191 = vpack.c.b16 %v164, %v161
    %v192 = vpack.c.b16 %v165, %v162
    %v193 = vpack.c.b16 %v169, %v166
    %v194 = vpack.c.b16 %v170, %v167
    %v195 = vpack.c.b16 %v171, %v168
    %220 = vmatpush.bf16.msra.mxu0 %v193
    %221 = vmatpush.bf16.msra.mxu0 %v190
    %222 = vmatpush.bf16.msra.mxu0 %v187
    %223 = vmatpush.bf16.msra.mxu0 %v184
    %224 = vmatpush.bf16.msra.mxu0 %v181
    %225 = vmatpush.bf16.msra.mxu0 %v178
    %226 = vmatpush.bf16.msra.mxu0 %v175
    %227 = vmatpush.bf16.msra.mxu0 %v172
    %228 = vmatmul.bf16.gmra.mxu0 %v90
    %v229 = vpop.f32.mrf.mxu0
    %v230 = vadd.f32 %v80, %v229
    %v231 = vpop.f32.mrf.mxu0
    %v232 = vadd.f32 %v80, %v231
    %233 = vdwg.mxu0
    %234 = vmatpush.bf16.msra.mxu0 %v194
    %235 = vmatpush.bf16.msra.mxu0 %v191
    %236 = vmatpush.bf16.msra.mxu0 %v188
    %237 = vmatpush.bf16.msra.mxu0 %v185
    %238 = vmatpush.bf16.msra.mxu0 %v182
    %239 = vmatpush.bf16.msra.mxu0 %v179
    %240 = vmatpush.bf16.msra.mxu0 %v176
    %241 = vmatpush.bf16.msra.mxu0 %v173
    %242 = vmatmul.bf16.gmra.mxu0 %v90
    %v243 = vpop.f32.mrf.mxu0
    %v244 = vadd.f32 %v81, %v243
    %v245 = vpop.f32.mrf.mxu0
    %v246 = vadd.f32 %v81, %v245
    %247 = vdwg.mxu0
    %248 = vmatpush.bf16.msra.mxu0 %v195
    %249 = vmatpush.bf16.msra.mxu0 %v192
    %250 = vmatpush.bf16.msra.mxu0 %v189
    %251 = vmatpush.bf16.msra.mxu0 %v186
    %252 = vmatpush.bf16.msra.mxu0 %v183
    %253 = vmatpush.bf16.msra.mxu0 %v180
    %254 = vmatpush.bf16.msra.mxu0 %v177
    %255 = vmatpush.bf16.msra.mxu0 %v174
    %256 = vmatmul.bf16.gmra.mxu0 %v90
    %v257 = vpop.f32.mrf.mxu0
    %v258 = vadd.f32 %v82, %v257
    %v259 = vpop.f32.mrf.mxu0
    %v260 = vadd.f32 %v82, %v259
    %261 = vdwg.mxu0
    %v262 = vld [vmem:[%s3] sm:$0xf]
    %v263 = vld [vmem:[%s3 + $0x4] sm:$0xf]
    %v264 = vld [vmem:[%s3 + $0x8] sm:$0xf]
    %v265 = vld [vmem:[%s3 + $0xc] sm:$0xf]
    %v266 = vld [vmem:[%s3 + $0x10] sm:$0xf]
    %v267 = vld [vmem:[%s3 + $0x14] sm:$0xf]
    %v268 = vld [vmem:[%s3 + $0x18] sm:$0xf]
    %v269 = vld [vmem:[%s3 + $0x1c] sm:$0xf]
    %v270 = vld [vmem:[%s3 + $0x20] sm:$0xf]
    %v271 = vld [vmem:[%s3 + $0x24] sm:$0xf]
    %v272 = vld [vmem:[%s3 + $0x28] sm:$0xf]
    %v273 = vld [vmem:[%s3 + $0x2c] sm:$0xf]
    %v274 = vld [vmem:[%s3 + $0x30] sm:$0xf]
    %v275 = vld [vmem:[%s3 + $0x34] sm:$0xf]
    %v276 = vld [vmem:[%s3 + $0x38] sm:$0xf]
    %v277 = vld [vmem:[%s3 + $0x3c] sm:$0xf]
    %v294 = vunpack.c.l.b16 %v262
    %v295 = vunpack.c.l.b16 %v263
    %v296 = vunpack.c.l.b16 %v264
    %v297 = vunpack.c.l.b16 %v265
    %v298 = vunpack.c.l.b16 %v266
    %v299 = vunpack.c.l.b16 %v267
    %v300 = vunpack.c.l.b16 %v268
    %v301 = vunpack.c.l.b16 %v269
    %v302 = vunpack.c.l.b16 %v270
    %v303 = vunpack.c.l.b16 %v271
    %v304 = vunpack.c.l.b16 %v272
    %v305 = vunpack.c.l.b16 %v273
    %v306 = vunpack.c.l.b16 %v274
    %v307 = vunpack.c.l.b16 %v275
    %v308 = vunpack.c.l.b16 %v276
    %v309 = vunpack.c.l.b16 %v277
    %v310 = vpack.c.b16 %v295, %v294
    %v311 = vpack.c.b16 %v297, %v296
    %v312 = vpack.c.b16 %v299, %v298
    %v313 = vpack.c.b16 %v301, %v300
    %v314 = vpack.c.b16 %v303, %v302
    %v315 = vpack.c.b16 %v305, %v304
    %v316 = vpack.c.b16 %v307, %v306
    %v317 = vpack.c.b16 %v309, %v308
    %326 = vmatpush.bf16.msra.mxu0 %v317
    %327 = vmatpush.bf16.msra.mxu0 %v316
    %328 = vmatpush.bf16.msra.mxu0 %v315
    %329 = vmatpush.bf16.msra.mxu0 %v314
    %330 = vmatpush.bf16.msra.mxu0 %v313
    %331 = vmatpush.bf16.msra.mxu0 %v312
    %332 = vmatpush.bf16.msra.mxu0 %v311
    %333 = vmatpush.bf16.msra.mxu0 %v310
    %334 = vmatmul.bf16.gmra.mxu0 %v90
    %v335 = vpop.f32.mrf.mxu0
    %v336 = vadd.f32 0.0, %v335
    %v337 = vpop.f32.mrf.mxu0
    %v338 = vadd.f32 0.0, %v337
    %339 = vdwg.mxu0
    %v340 = vpack.c.bf16 %v338, %v336
    %v341 = vld [vmem:[%s5] sm:$0xf]
    %v342 = vld [vmem:[%s5 + $0x4] sm:$0xf]
    %v343 = vld [vmem:[%s5 + $0x8] sm:$0xf]
    %v344 = vld [vmem:[%s5 + $0xc] sm:$0xf]
    %v345 = vld [vmem:[%s5 + $0x10] sm:$0xf]
    %v346 = vld [vmem:[%s5 + $0x14] sm:$0xf]
    %v347 = vld [vmem:[%s5 + $0x18] sm:$0xf]
    %v348 = vld [vmem:[%s5 + $0x1c] sm:$0xf]
    %v349 = vld [vmem:[%s5 + $0x20] sm:$0xf]
    %v350 = vld [vmem:[%s5 + $0x24] sm:$0xf]
    %v351 = vld [vmem:[%s5 + $0x28] sm:$0xf]
    %v352 = vld [vmem:[%s5 + $0x2c] sm:$0xf]
    %v353 = vld [vmem:[%s5 + $0x30] sm:$0xf]
    %v354 = vld [vmem:[%s5 + $0x34] sm:$0xf]
    %v355 = vld [vmem:[%s5 + $0x38] sm:$0xf]
    %v356 = vld [vmem:[%s5 + $0x3c] sm:$0xf]
    %v373 = vunpack.c.l.b16 %v341
    %v374 = vunpack.c.l.b16 %v342
    %v375 = vunpack.c.l.b16 %v343
    %v376 = vunpack.c.l.b16 %v344
    %v377 = vunpack.c.l.b16 %v345
    %v378 = vunpack.c.l.b16 %v346
    %v379 = vunpack.c.l.b16 %v347
    %v380 = vunpack.c.l.b16 %v348
    %v381 = vunpack.c.l.b16 %v349
    %v382 = vunpack.c.l.b16 %v350
    %v383 = vunpack.c.l.b16 %v351
    %v384 = vunpack.c.l.b16 %v352
    %v385 = vunpack.c.l.b16 %v353
    %v386 = vunpack.c.l.b16 %v354
    %v387 = vunpack.c.l.b16 %v355
    %v388 = vunpack.c.l.b16 %v356
    %v389 = vpack.c.b16 %v374, %v373
    %v390 = vpack.c.b16 %v376, %v375
    %v391 = vpack.c.b16 %v378, %v377
    %v392 = vpack.c.b16 %v380, %v379
    %v393 = vpack.c.b16 %v382, %v381
    %v394 = vpack.c.b16 %v384, %v383
    %v395 = vpack.c.b16 %v386, %v385
    %v396 = vpack.c.b16 %v388, %v387
    %405 = vmatpush.bf16.msra.mxu0 %v396
    %406 = vmatpush.bf16.msra.mxu0 %v395
    %407 = vmatpush.bf16.msra.mxu0 %v394
    %408 = vmatpush.bf16.msra.mxu0 %v393
    %409 = vmatpush.bf16.msra.mxu0 %v392
    %410 = vmatpush.bf16.msra.mxu0 %v391
    %411 = vmatpush.bf16.msra.mxu0 %v390
    %412 = vmatpush.bf16.msra.mxu0 %v389
    %413 = vmatmul.bf16.gmra.mxu0 %v90
    %v414 = vpop.f32.mrf.mxu0
    %v415 = vadd.f32 0.0, %v414
    %v416 = vpop.f32.mrf.mxu0
    %v417 = vadd.f32 0.0, %v416
    %418 = vdwg.mxu0
    %v419 = vpack.c.bf16 %v417, %v415
    %v420 = vld [vmem:[%s4] sm:$0x3]
    %vm421 = vcmask 31744
    %v423 = vsel %vm421, %v340, 0
    %vm425 = vcmask 1041408
    %v427 = vsel %vm425, %v420, 0
    %429 = vmatpush.bf16.msra.mxu0 0
    %430 = vmatpush.bf16.msra.mxu0 0
    %431 = vmatpush.bf16.msra.mxu0 0
    %432 = vmatpush.bf16.msra.mxu0 0
    %433 = vmatpush.bf16.msra.mxu0 0
    %434 = vmatpush.bf16.msra.mxu0 0
    %435 = vmatpush.bf16.msra.mxu0 0
    %436 = vmatpush.bf16.msra.mxu0 %v427
    %437 = vmatmul.bf16.gmra.mxu0 %v423
    %v438 = vpop.f32.mrf.mxu0
    %v439 = vadd.f32 0.0, %v438
    %v440 = vpop.f32.mrf.mxu0
    %v441 = vadd.f32 0.0, %v440
    %442 = vdwg.mxu0
    %v443 = vld [vmem:[%s6] sm:$0x3]
    %v445 = vsel %vm421, %v419, 0
    %v448 = vsel %vm425, %v443, 0
    %450 = vmatpush.bf16.msra.mxu0 0
    %451 = vmatpush.bf16.msra.mxu0 0
    %452 = vmatpush.bf16.msra.mxu0 0
    %453 = vmatpush.bf16.msra.mxu0 0
    %454 = vmatpush.bf16.msra.mxu0 0
    %455 = vmatpush.bf16.msra.mxu0 0
    %456 = vmatpush.bf16.msra.mxu0 0
    %457 = vmatpush.bf16.msra.mxu0 %v448
    %458 = vmatmul.bf16.gmra.mxu0 %v445
    %v459 = vpop.f32.mrf.mxu0
    %v460 = vadd.f32 0.0, %v459
    %v461 = vpop.f32.mrf.mxu0
    %v462 = vadd.f32 0.0, %v461
    %463 = vdwg.mxu0
    %v464 = vadd.f32 %v230, %v439
    %v465 = vadd.f32 %v232, %v441
    %466 = vst [vmem:[#allocation5] sm:$0xff] %v464
    %467 = vst [vmem:[#allocation5 + $0x18] sm:$0xff] %v465
    %468 = vst [vmem:[#allocation5 + $0x8] sm:$0xff] %v244
    %469 = vst [vmem:[#allocation5 + $0x20] sm:$0xff] %v246
    %v470 = vadd.f32 %v258, %v460
    %v471 = vadd.f32 %v260, %v462
    %472 = vst [vmem:[#allocation5 + $0x10] sm:$0xff] %v470
    %473 = vst [vmem:[#allocation5 + $0x28] sm:$0xff] %v471
    // Predicated region
    $region34: #{tpu_custom_call.1} parent=1 // pred_check
      _
    $region35: #{tpu_custom_call.1} parent=1 // pred_check_branch
      %475 = sbr.rel (0) target = $region37
    $region36: #{tpu_custom_call.1} parent=1 // pred_region
      %477 = vsyncadd [#allocation4], 0
      %s478 = sshll.u32 [#allocation5], 4
      %s479 = int_to_ptr.vmem [resolvable:$true] %s478
      %s480 = sshll.u32 %s7, 4
      %s481 = int_to_ptr.hbm [resolvable:$true] %s480
      %486 = dma.vmem_to_hbm [thread:$0]  %s479, 768, %s481, [#allocation4], 384, 384, 24
    $region37: #{tpu_custom_call.1} parent=1 // pred_fallthru
      _
    // Predicated region
    $region38: #{tpu_custom_call.1} parent=1 // pred_check
      _
    $region39: #{tpu_custom_call.1} parent=1 // pred_check_branch
      %488 = sbr.rel (0) target = $region41
    $region40: #{tpu_custom_call.1} parent=1 // pred_region
      %490 = dma.done [#allocation4], 768
    $region41: #{tpu_custom_call.1} parent=1 // pred_fallthru
      _
    %491 = vsyncpa [#allocation3], 1
    %492 = vsyncpa [#allocation4], 1

// kernel: tpu_custom_call.1
$region0: #{tpu_custom_call.1}
  #allocation0 [shape = 'u32[]', space=smem, size = 0x4, offset = 0x4, fixed_abs, tag = 'smem constant byte address 0x4 - core index']
  #allocation1 [shape = 'u32[72,128]{1,0:T(1,128)}', space=vmem, size = 0x9000, scoped, tag = 'internal scratch']
  %s0 = inlined_call_operand.vmem [shape: bf16[16,128], index: 0, kind: input, shape index: {}]
  %s1 = inlined_call_operand.hbm [shape: bf16[128,384], index: 1, kind: input, shape index: {}]
  %s2 = inlined_call_operand.vmem [shape: f32[1,384], index: 2, kind: input, shape index: {}]
  %s3 = inlined_call_operand.vmem [shape: bf16[128,4], index: 3, kind: input, shape index: {}]
  %s4 = inlined_call_operand.vmem [shape: bf16[4,128], index: 4, kind: input, shape index: {}]
  %s5 = inlined_call_operand.vmem [shape: bf16[128,4], index: 5, kind: input, shape index: {}]
  %s6 = inlined_call_operand.vmem [shape: bf16[4,128], index: 6, kind: input, shape index: {}]
  %s7 = inlined_call_operand.hbm [shape: f32[16,384], index: 7, kind: output, shape index: {}]
  %s8 = sld [smem:[#allocation0]]
  $region42: #{tpu_custom_call.1} parent=0
    _
  %s10 = ssub.s32 1, %s8
  %s11 = scalar_select 0, %s10, %s8
  $region1: #{tpu_custom_call.1} parent=0
    #allocation2 [shape = 'u8[98304]{0}', space=vmem, size = 0x18000, scoped, tag = 'input window, operand 1, single buffered']
    #allocation3 [shape = 's32[1]{0}', space=sflag, size = 0x4, scoped, tag = 'scoped memory for tpu_custom_call.1']
    #allocation4 [shape = 's32[1]{0}', space=sflag, size = 0x4, scoped, tag = 'scoped memory for tpu_custom_call.1']
    #allocation5 [shape = 'u8[24576]{0}', space=vmem, size = 0x6000, scoped, tag = 'output window, operand 0, single buffered']
    %12 = vsyncpa [#allocation3], 0
    %13 = vsyncpa [#allocation4], 0
    // Predicated region
    $region2: #{tpu_custom_call.1} parent=1 // pred_check
      _
    $region3: #{tpu_custom_call.1} parent=1 // pred_check_branch
      %15 = sbr.rel (0) target = $region5
    $region4: #{tpu_custom_call.1} parent=1 // pred_region
      _
    $region5: #{tpu_custom_call.1} parent=1 // pred_fallthru
      _
    // Predicated region
    $region6: #{tpu_custom_call.1} parent=1 // pred_check
      _
    $region7: #{tpu_custom_call.1} parent=1 // pred_check_branch
      %17 = sbr.rel (0) target = $region9
    $region8: #{tpu_custom_call.1} parent=1 // pred_region
      %19 = vsyncadd [#allocation3], 0
      %s20 = sshll.u32 %s1, 4
      %s21 = int_to_ptr.hbm [resolvable:$true] %s20
      %s22 = sshll.u32 [#allocation2], 4
      %s23 = int_to_ptr.vmem [resolvable:$true] %s22
      %28 = dma.hbm_to_vmem [thread:$0]  %s21, 3072, %s23, [#allocation3], 192, 192, 12
    $region9: #{tpu_custom_call.1} parent=1 // pred_fallthru
      _
    // Predicated region
    $region10: #{tpu_custom_call.1} parent=1 // pred_check
      _
    $region11: #{tpu_custom_call.1} parent=1 // pred_check_branch
      %30 = sbr.rel (0) target = $region13
    $region12: #{tpu_custom_call.1} parent=1 // pred_region
      _
    $region13: #{tpu_custom_call.1} parent=1 // pred_fallthru
      _
    // Predicated region
    $region14: #{tpu_custom_call.1} parent=1 // pred_check
      _
    $region15: #{tpu_custom_call.1} parent=1 // pred_check_branch
      %32 = sbr.rel (0) target = $region17
    $region16: #{tpu_custom_call.1} parent=1 // pred_region
      _
    $region17: #{tpu_custom_call.1} parent=1 // pred_fallthru
      _
    // Predicated region
    $region18: #{tpu_custom_call.1} parent=1 // pred_check
      _
    $region19: #{tpu_custom_call.1} parent=1 // pred_check_branch
      %34 = sbr.rel (0) target = $region21
    $region20: #{tpu_custom_call.1} parent=1 // pred_region
      _
    $region21: #{tpu_custom_call.1} parent=1 // pred_fallthru
      _
    // Predicated region
    $region22: #{tpu_custom_call.1} parent=1 // pred_check
      _
    $region23: #{tpu_custom_call.1} parent=1 // pred_check_branch
      %36 = sbr.rel (0) target = $region25
    $region24: #{tpu_custom_call.1} parent=1 // pred_region
      _
    $region25: #{tpu_custom_call.1} parent=1 // pred_fallthru
      _
    // Predicated region
    $region26: #{tpu_custom_call.1} parent=1 // pred_check
      _
    $region27: #{tpu_custom_call.1} parent=1 // pred_check_branch
      %38 = sbr.rel (0) target = $region29
    $region28: #{tpu_custom_call.1} parent=1 // pred_region
      _
    $region29: #{tpu_custom_call.1} parent=1 // pred_fallthru
      _
    // Predicated region
    $region30: #{tpu_custom_call.1} parent=1 // pred_check
      _
    $region31: #{tpu_custom_call.1} parent=1 // pred_check_branch
      %40 = sbr.rel (0) target = $region33
    $region32: #{tpu_custom_call.1} parent=1 // pred_region
      %42 = dma.done [#allocation3], 3072
    $region33: #{tpu_custom_call.1} parent=1 // pred_fallthru
      _
    %v44 = vld [vmem:[%s0] sm:$0xf]
    %v45 = vld [vmem:[%s0 + $0x4] sm:$0xf]
    %v46 = vld [vmem:[#allocation2] sm:$0xff]
    %v47 = vld [vmem:[#allocation2 + $0x8] sm:$0xf]
    %v48 = vld [vmem:[#allocation2 + $0xc] sm:$0xff]
    %v49 = vld [vmem:[#allocation2 + $0x14] sm:$0xf]
    %v50 = vld [vmem:[#allocation2 + $0x18] sm:$0xff]
    %v51 = vld [vmem:[#allocation2 + $0x20] sm:$0xf]
    %v52 = vld [vmem:[#allocation2 + $0x24] sm:$0xff]
    %v53 = vld [vmem:[#allocation2 + $0x2c] sm:$0xf]
    %v54 = vld [vmem:[#allocation2 + $0x30] sm:$0xff]
    %v55 = vld [vmem:[#allocation2 + $0x38] sm:$0xf]
    %v56 = vld [vmem:[#allocation2 + $0x3c] sm:$0xff]
    %v57 = vld [vmem:[#allocation2 + $0x44] sm:$0xf]
    %v58 = vld [vmem:[#allocation2 + $0x48] sm:$0xff]
    %v59 = vld [vmem:[#allocation2 + $0x50] sm:$0xf]
    %v60 = vld [vmem:[#allocation2 + $0x54] sm:$0xff]
    %v61 = vld [vmem:[#allocation2 + $0x5c] sm:$0xf]
    %v62 = vld [vmem:[#allocation2 + $0x60] sm:$0xff]
    %v63 = vld [vmem:[#allocation2 + $0x68] sm:$0xf]
    %v64 = vld [vmem:[#allocation2 + $0x6c] sm:$0xff]
    %v65 = vld [vmem:[#allocation2 + $0x74] sm:$0xf]
    %v66 = vld [vmem:[#allocation2 + $0x78] sm:$0xff]
    %v67 = vld [vmem:[#allocation2 + $0x80] sm:$0xf]
    %v68 = vld [vmem:[#allocation2 + $0x84] sm:$0xff]
    %v69 = vld [vmem:[#allocation2 + $0x8c] sm:$0xf]
    %v70 = vld [vmem:[#allocation2 + $0x90] sm:$0xff]
    %v71 = vld [vmem:[#allocation2 + $0x98] sm:$0xf]
    %v72 = vld [vmem:[#allocation2 + $0x9c] sm:$0xff]
    %v73 = vld [vmem:[#allocation2 + $0xa4] sm:$0xf]
    %v74 = vld [vmem:[#allocation2 + $0xa8] sm:$0xff]
    %v75 = vld [vmem:[#allocation2 + $0xb0] sm:$0xf]
    %v76 = vld [vmem:[#allocation2 + $0xb4] sm:$0xff]
    %v77 = vld [vmem:[#allocation2 + $0xbc] sm:$0xf]
    %v78 = vld [vmem:[%s2] sm:$0x7]
    %v80 = vperm.slane %v78, 0
    %v81 = vperm.slane %v78, 1
    %v82 = vperm.slane %v78, 2
    %v88 = vunpack.c.l.b16 %v44
    %v89 = vunpack.c.l.b16 %v45
    %v90 = vpack.c.b16 %v89, %v88
    %v124 = vunpack.c.l.b16 %v46
    %v125 = vunpack.c.h.b16 %v46
    %v126 = vunpack.c.l.b16 %v47
    %v127 = vunpack.c.l.b16 %v48
    %v128 = vunpack.c.h.b16 %v48
    %v129 = vunpack.c.l.b16 %v49
    %v130 = vunpack.c.l.b16 %v50
    %v131 = vunpack.c.h.b16 %v50
    %v132 = vunpack.c.l.b16 %v51
    %v133 = vunpack.c.l.b16 %v52
    %v134 = vunpack.c.h.b16 %v52
    %v135 = vunpack.c.l.b16 %v53
    %v136 = vunpack.c.l.b16 %v54
    %v137 = vunpack.c.h.b16 %v54
    %v138 = vunpack.c.l.b16 %v55
    %v139 = vunpack.c.l.b16 %v56
    %v140 = vunpack.c.h.b16 %v56
    %v141 = vunpack.c.l.b16 %v57
    %v142 = vunpack.c.l.b16 %v58
    %v143 = vunpack.c.h.b16 %v58
    %v144 = vunpack.c.l.b16 %v59
    %v145 = vunpack.c.l.b16 %v60
    %v146 = vunpack.c.h.b16 %v60
    %v147 = vunpack.c.l.b16 %v61
    %v148 = vunpack.c.l.b16 %v62
    %v149 = vunpack.c.h.b16 %v62
    %v150 = vunpack.c.l.b16 %v63
    %v151 = vunpack.c.l.b16 %v64
    %v152 = vunpack.c.h.b16 %v64
    %v153 = vunpack.c.l.b16 %v65
    %v154 = vunpack.c.l.b16 %v66
    %v155 = vunpack.c.h.b16 %v66
    %v156 = vunpack.c.l.b16 %v67
    %v157 = vunpack.c.l.b16 %v68
    %v158 = vunpack.c.h.b16 %v68
    %v159 = vunpack.c.l.b16 %v69
    %v160 = vunpack.c.l.b16 %v70
    %v161 = vunpack.c.h.b16 %v70
    %v162 = vunpack.c.l.b16 %v71
    %v163 = vunpack.c.l.b16 %v72
    %v164 = vunpack.c.h.b16 %v72
    %v165 = vunpack.c.l.b16 %v73
    %v166 = vunpack.c.l.b16 %v74
    %v167 = vunpack.c.h.b16 %v74
    %v168 = vunpack.c.l.b16 %v75
    %v169 = vunpack.c.l.b16 %v76
    %v170 = vunpack.c.h.b16 %v76
    %v171 = vunpack.c.l.b16 %v77
    %v172 = vpack.c.b16 %v127, %v124
    %v173 = vpack.c.b16 %v128, %v125
    %v174 = vpack.c.b16 %v129, %v126
    %v175 = vpack.c.b16 %v133, %v130
    %v176 = vpack.c.b16 %v134, %v131
    %v177 = vpack.c.b16 %v135, %v132
    %v178 = vpack.c.b16 %v139, %v136
    %v179 = vpack.c.b16 %v140, %v137
    %v180 = vpack.c.b16 %v141, %v138
    %v181 = vpack.c.b16 %v145, %v142
    %v182 = vpack.c.b16 %v146, %v143
    %v183 = vpack.c.b16 %v147, %v144
    %v184 = vpack.c.b16 %v151, %v148
    %v185 = vpack.c.b16 %v152, %v149
    %v186 = vpack.c.b16 %v153, %v150
    %v187 = vpack.c.b16 %v157, %v154
    %v188 = vpack.c.b16 %v158, %v155
    %v189 = vpack.c.b16 %v159, %v156
    %v190 = vpack.c.b16 %v163, %v160
    %v191 = vpack.c.b16 %v164, %v161
    %v192 = vpack.c.b16 %v165, %v162
    %v193 = vpack.c.b16 %v169, %v166
    %v194 = vpack.c.b16 %v170, %v167
    %v195 = vpack.c.b16 %v171, %v168
    %220 = vmatpush.bf16.msra.mxu0 %v193
    %221 = vmatpush.bf16.msra.mxu0 %v190
    %222 = vmatpush.bf16.msra.mxu0 %v187
    %223 = vmatpush.bf16.msra.mxu0 %v184
    %224 = vmatpush.bf16.msra.mxu0 %v181
    %225 = vmatpush.bf16.msra.mxu0 %v178
    %226 = vmatpush.bf16.msra.mxu0 %v175
    %227 = vmatpush.bf16.msra.mxu0 %v172
    %228 = vmatmul.bf16.gmra.mxu0 %v90
    %v229 = vpop.f32.mrf.mxu0
    %v230 = vadd.f32 %v80, %v229
    %v231 = vpop.f32.mrf.mxu0
    %v232 = vadd.f32 %v80, %v231
    %233 = vdwg.mxu0
    %234 = vmatpush.bf16.msra.mxu0 %v194
    %235 = vmatpush.bf16.msra.mxu0 %v191
    %236 = vmatpush.bf16.msra.mxu0 %v188
    %237 = vmatpush.bf16.msra.mxu0 %v185
    %238 = vmatpush.bf16.msra.mxu0 %v182
    %239 = vmatpush.bf16.msra.mxu0 %v179
    %240 = vmatpush.bf16.msra.mxu0 %v176
    %241 = vmatpush.bf16.msra.mxu0 %v173
    %242 = vmatmul.bf16.gmra.mxu0 %v90
    %v243 = vpop.f32.mrf.mxu0
    %v244 = vadd.f32 %v81, %v243
    %v245 = vpop.f32.mrf.mxu0
    %v246 = vadd.f32 %v81, %v245
    %247 = vdwg.mxu0
    %248 = vmatpush.bf16.msra.mxu0 %v195
    %249 = vmatpush.bf16.msra.mxu0 %v192
    %250 = vmatpush.bf16.msra.mxu0 %v189
    %251 = vmatpush.bf16.msra.mxu0 %v186
    %252 = vmatpush.bf16.msra.mxu0 %v183
    %253 = vmatpush.bf16.msra.mxu0 %v180
    %254 = vmatpush.bf16.msra.mxu0 %v177
    %255 = vmatpush.bf16.msra.mxu0 %v174
    %256 = vmatmul.bf16.gmra.mxu0 %v90
    %v257 = vpop.f32.mrf.mxu0
    %v258 = vadd.f32 %v82, %v257
    %v259 = vpop.f32.mrf.mxu0
    %v260 = vadd.f32 %v82, %v259
    %261 = vdwg.mxu0
    %v262 = vld [vmem:[%s3] sm:$0xf]
    %v263 = vld [vmem:[%s3 + $0x4] sm:$0xf]
    %v264 = vld [vmem:[%s3 + $0x8] sm:$0xf]
    %v265 = vld [vmem:[%s3 + $0xc] sm:$0xf]
    %v266 = vld [vmem:[%s3 + $0x10] sm:$0xf]
    %v267 = vld [vmem:[%s3 + $0x14] sm:$0xf]
    %v268 = vld [vmem:[%s3 + $0x18] sm:$0xf]
    %v269 = vld [vmem:[%s3 + $0x1c] sm:$0xf]
    %v270 = vld [vmem:[%s3 + $0x20] sm:$0xf]
    %v271 = vld [vmem:[%s3 + $0x24] sm:$0xf]
    %v272 = vld [vmem:[%s3 + $0x28] sm:$0xf]
    %v273 = vld [vmem:[%s3 + $0x2c] sm:$0xf]
    %v274 = vld [vmem:[%s3 + $0x30] sm:$0xf]
    %v275 = vld [vmem:[%s3 + $0x34] sm:$0xf]
    %v276 = vld [vmem:[%s3 + $0x38] sm:$0xf]
    %v277 = vld [vmem:[%s3 + $0x3c] sm:$0xf]
    %v294 = vunpack.c.l.b16 %v262
    %v295 = vunpack.c.l.b16 %v263
    %v296 = vunpack.c.l.b16 %v264
    %v297 = vunpack.c.l.b16 %v265
    %v298 = vunpack.c.l.b16 %v266
    %v299 = vunpack.c.l.b16 %v267
    %v300 = vunpack.c.l.b16 %v268
    %v301 = vunpack.c.l.b16 %v269
    %v302 = vunpack.c.l.b16 %v270
    %v303 = vunpack.c.l.b16 %v271
    %v304 = vunpack.c.l.b16 %v272
    %v305 = vunpack.c.l.b16 %v273
    %v306 = vunpack.c.l.b16 %v274
    %v307 = vunpack.c.l.b16 %v275
    %v308 = vunpack.c.l.b16 %v276
    %v309 = vunpack.c.l.b16 %v277
    %v310 = vpack.c.b16 %v295, %v294
    %v311 = vpack.c.b16 %v297, %v296
    %v312 = vpack.c.b16 %v299, %v298
    %v313 = vpack.c.b16 %v301, %v300
    %v314 = vpack.c.b16 %v303, %v302
    %v315 = vpack.c.b16 %v305, %v304
    %v316 = vpack.c.b16 %v307, %v306
    %v317 = vpack.c.b16 %v309, %v308
    %326 = vmatpush.bf16.msra.mxu0 %v317
    %327 = vmatpush.bf16.msra.mxu0 %v316
    %328 = vmatpush.bf16.msra.mxu0 %v315
    %329 = vmatpush.bf16.msra.mxu0 %v314
    %330 = vmatpush.bf16.msra.mxu0 %v313
    %331 = vmatpush.bf16.msra.mxu0 %v312
    %332 = vmatpush.bf16.msra.mxu0 %v311
    %333 = vmatpush.bf16.msra.mxu0 %v310
    %334 = vmatmul.bf16.gmra.mxu0 %v90
    %v335 = vpop.f32.mrf.mxu0
    %v336 = vadd.f32 0.0, %v335
    %v337 = vpop.f32.mrf.mxu0
    %v338 = vadd.f32 0.0, %v337
    %339 = vdwg.mxu0
    %v340 = vpack.c.bf16 %v338, %v336
    %v341 = vld [vmem:[%s5] sm:$0xf]
    %v342 = vld [vmem:[%s5 + $0x4] sm:$0xf]
    %v343 = vld [vmem:[%s5 + $0x8] sm:$0xf]
    %v344 = vld [vmem:[%s5 + $0xc] sm:$0xf]
    %v345 = vld [vmem:[%s5 + $0x10] sm:$0xf]
    %v346 = vld [vmem:[%s5 + $0x14] sm:$0xf]
    %v347 = vld [vmem:[%s5 + $0x18] sm:$0xf]
    %v348 = vld [vmem:[%s5 + $0x1c] sm:$0xf]
    %v349 = vld [vmem:[%s5 + $0x20] sm:$0xf]
    %v350 = vld [vmem:[%s5 + $0x24] sm:$0xf]
    %v351 = vld [vmem:[%s5 + $0x28] sm:$0xf]
    %v352 = vld [vmem:[%s5 + $0x2c] sm:$0xf]
    %v353 = vld [vmem:[%s5 + $0x30] sm:$0xf]
    %v354 = vld [vmem:[%s5 + $0x34] sm:$0xf]
    %v355 = vld [vmem:[%s5 + $0x38] sm:$0xf]
    %v356 = vld [vmem:[%s5 + $0x3c] sm:$0xf]
    %v373 = vunpack.c.l.b16 %v341
    %v374 = vunpack.c.l.b16 %v342
    %v375 = vunpack.c.l.b16 %v343
    %v376 = vunpack.c.l.b16 %v344
    %v377 = vunpack.c.l.b16 %v345
    %v378 = vunpack.c.l.b16 %v346
    %v379 = vunpack.c.l.b16 %v347
    %v380 = vunpack.c.l.b16 %v348
    %v381 = vunpack.c.l.b16 %v349
    %v382 = vunpack.c.l.b16 %v350
    %v383 = vunpack.c.l.b16 %v351
    %v384 = vunpack.c.l.b16 %v352
    %v385 = vunpack.c.l.b16 %v353
    %v386 = vunpack.c.l.b16 %v354
    %v387 = vunpack.c.l.b16 %v355
    %v388 = vunpack.c.l.b16 %v356
    %v389 = vpack.c.b16 %v374, %v373
    %v390 = vpack.c.b16 %v376, %v375
    %v391 = vpack.c.b16 %v378, %v377
    %v392 = vpack.c.b16 %v380, %v379
    %v393 = vpack.c.b16 %v382, %v381
    %v394 = vpack.c.b16 %v384, %v383
    %v395 = vpack.c.b16 %v386, %v385
    %v396 = vpack.c.b16 %v388, %v387
    %405 = vmatpush.bf16.msra.mxu0 %v396
    %406 = vmatpush.bf16.msra.mxu0 %v395
    %407 = vmatpush.bf16.msra.mxu0 %v394
    %408 = vmatpush.bf16.msra.mxu0 %v393
    %409 = vmatpush.bf16.msra.mxu0 %v392
    %410 = vmatpush.bf16.msra.mxu0 %v391
    %411 = vmatpush.bf16.msra.mxu0 %v390
    %412 = vmatpush.bf16.msra.mxu0 %v389
    %413 = vmatmul.bf16.gmra.mxu0 %v90
    %v414 = vpop.f32.mrf.mxu0
    %v415 = vadd.f32 0.0, %v414
    %v416 = vpop.f32.mrf.mxu0
    %v417 = vadd.f32 0.0, %v416
    %418 = vdwg.mxu0
    %v419 = vpack.c.bf16 %v417, %v415
    %v420 = vld [vmem:[%s4] sm:$0x3]
    %vm421 = vcmask 31744
    %v423 = vsel %vm421, %v340, 0
    %vm425 = vcmask 1041408
    %v427 = vsel %vm425, %v420, 0
    %429 = vmatpush.bf16.msra.mxu0 0
    %430 = vmatpush.bf16.msra.mxu0 0
    %431 = vmatpush.bf16.msra.mxu0 0
    %432 = vmatpush.bf16.msra.mxu0 0
    %433 = vmatpush.bf16.msra.mxu0 0
    %434 = vmatpush.bf16.msra.mxu0 0
    %435 = vmatpush.bf16.msra.mxu0 0
    %436 = vmatpush.bf16.msra.mxu0 %v427
    %437 = vmatmul.bf16.gmra.mxu0 %v423
    %v438 = vpop.f32.mrf.mxu0
    %v439 = vadd.f32 0.0, %v438
    %v440 = vpop.f32.mrf.mxu0
    %v441 = vadd.f32 0.0, %v440
    %442 = vdwg.mxu0
    %v443 = vld [vmem:[%s6] sm:$0x3]
    %v445 = vsel %vm421, %v419, 0
    %v448 = vsel %vm425, %v443, 0
    %450 = vmatpush.bf16.msra.mxu0 0
    %451 = vmatpush.bf16.msra.mxu0 0
    %452 = vmatpush.bf16.msra.mxu0 0
    %453 = vmatpush.bf16.msra.mxu0 0
    %454 = vmatpush.bf16.msra.mxu0 0
    %455 = vmatpush.bf16.msra.mxu0 0
    %456 = vmatpush.bf16.msra.mxu0 0
    %457 = vmatpush.bf16.msra.mxu0 %v448
    %458 = vmatmul.bf16.gmra.mxu0 %v445
    %v459 = vpop.f32.mrf.mxu0
    %v460 = vadd.f32 0.0, %v459
    %v461 = vpop.f32.mrf.mxu0
    %v462 = vadd.f32 0.0, %v461
    %463 = vdwg.mxu0
    %v464 = vadd.f32 %v230, %v439
    %v465 = vadd.f32 %v232, %v441
    %466 = vst [vmem:[#allocation5] sm:$0xff] %v464
    %467 = vst [vmem:[#allocation5 + $0x18] sm:$0xff] %v465
    %468 = vst [vmem:[#allocation5 + $0x8] sm:$0xff] %v244
    %469 = vst [vmem:[#allocation5 + $0x20] sm:$0xff] %v246
    %v470 = vadd.f32 %v258, %v460
    %v471 = vadd.f32 %v260, %v462
    %472 = vst [vmem:[#allocation5 + $0x10] sm:$0xff] %v470
    %473 = vst [vmem:[#allocation5 + $0x28] sm:$0xff] %v471
    // Predicated region
    $region34: #{tpu_custom_call.1} parent=1 // pred_check
      _
    $region35: #{tpu_custom_call.1} parent=1 // pred_check_branch
      %475 = sbr.rel (0) target = $region37
    $region36: #{tpu_custom_call.1} parent=1 // pred_region
      %477 = vsyncadd [#allocation4], 0
      %s478 = sshll.u32 [#allocation5], 4
      %s479 = int_to_ptr.vmem [resolvable:$true] %s478
      %s480 = sshll.u32 %s7, 4
      %s481 = int_to_ptr.hbm [resolvable:$true] %s480
      %486 = dma.vmem_to_hbm [thread:$0]  %s479, 768, %s481, [#allocation4], 384, 384, 24
    $region37: #{tpu_custom_call.1} parent=1 // pred_fallthru
      _
    // Predicated region
    $region38: #{tpu_custom_call.1} parent=1 // pred_check
      _
    $region39: #{tpu_custom_call.1} parent=1 // pred_check_branch
      %488 = sbr.rel (0) target = $region41
    $region40: #{tpu_custom_call.1} parent=1 // pred_region
      %490 = dma.done [#allocation4], 768
    $region41: #{tpu_custom_call.1} parent=1 // pred_fallthru
      _
    %491 = vsyncpa [#allocation3], 1
    %492 = vsyncpa [#allocation4], 1

</llo_original>
